<compile_context>
chip_gen: v5e
topology: v5e:2x2
jax: 0.10.0
libtpu: 0.0.40
codegen_flags: <defaults>
</compile_context>

<pallas_src>
import functools
import math

import jax
import jax.numpy as jnp
from jax.experimental import pallas as pl
from jax.experimental.pallas import tpu as pltpu

EPS = 1e-6
VMEM_LIMIT = 48 * 1024 * 1024        # raised scoped-VMEM limit (v5e default is only 16 MiB)
LN_BLOCK_BUDGET = 24 * 1024 * 1024   # budget for the 4 double-buffered LayerNorm tiles


def _round_up(v, m):
    return ((v + m - 1) // m) * m


def _pad2(a, r, c):
    pr, pc = r - a.shape[0], c - a.shape[1]
    if pr == 0 and pc == 0:
        return a
    return jnp.pad(a, ((0, pr), (0, pc)))


def _choose_tile(dim, base):
    # Full-dim block when small (allowed by the (8,128) rule); otherwise an
    # aligned base tile (the wrapper pads the array to a multiple of it).
    return dim if dim <= base else base


# ----------------------------------------------------------------------------
# Standalone LayerNormalization (fallback when LN cannot be fused into a matmul)
# Scalar alpha/bias, unbiased std, eps added to std.
# ----------------------------------------------------------------------------
def _layernorm_kernel(alpha_ref, bias_ref, x_ref, o_ref):
    x = x_ref[...].astype(jnp.float32)
    d = x.shape[-1]
    mean = jnp.mean(x, axis=-1, keepdims=True)
    diff = x - mean
    # torch.Tensor.std default is the unbiased estimator (divisor N-1).
    var = jnp.sum(diff * diff, axis=-1, keepdims=True) / jnp.float32(max(d - 1, 1))
    std = jnp.sqrt(var)
    inv = pl.reciprocal(std + EPS, approx=False)
    o_ref[...] = (alpha_ref[0] * diff * inv + bias_ref[0]).astype(o_ref.dtype)


def _pick_row_tile(rows, d, itemsize):
    per_row = 4 * d * itemsize                       # 2 in + 2 out double buffers
    t = max(8, min(LN_BLOCK_BUDGET // per_row, 2048))
    t = (t // 8) * 8
    t = min(t, _round_up(rows, 8))
    return max(t, 8)


def layer_norm(x2, alpha, bias):
    """x2: (rows, d) with d on the lane axis."""
    rows, d = x2.shape
    row_tile = _pick_row_tile(rows, d, jnp.dtype(x2.dtype).itemsize)
    rows_p = _round_up(rows, row_tile)
    xp = x2 if rows_p == rows else jnp.pad(x2, ((0, rows_p - rows), (0, 0)))
    grid = (rows_p // row_tile,)

    out = pl.pallas_call(
        _layernorm_kernel,
        out_shape=jax.ShapeDtypeStruct((rows_p, d), x2.dtype),
        grid_spec=pltpu.PrefetchScalarGridSpec(
            num_scalar_prefetch=0,
            grid=grid,
            in_specs=[
                pl.BlockSpec(memory_space=pltpu.SMEM),   # alpha (1,)
                pl.BlockSpec(memory_space=pltpu.SMEM),   # bias  (1,)
                pl.BlockSpec((row_tile, d), lambda i: (i, 0)),
            ],
            out_specs=pl.BlockSpec((row_tile, d), lambda i: (i, 0)),
        ),
        compiler_params=pltpu.CompilerParams(
            dimension_semantics=("parallel",),
            vmem_limit_bytes=VMEM_LIMIT,
        ),
    )(alpha, bias, xp)
    return out[:rows] if rows_p != rows else out


# ----------------------------------------------------------------------------
# Linear: y = [LN](x) @ W + b  (+ optional fused ReLU / residual add)
# Weights are stored (in, out) so no transpose is needed on TPU.
# ----------------------------------------------------------------------------
def _linear_kernel(*refs, use_ln, use_relu, use_residual, d_feat):
    idx = 0
    if use_ln:
        alpha_ref, bias_ref = refs[idx], refs[idx + 1]
        idx += 2
    x_ref, w_ref, b_ref = refs[idx], refs[idx + 1], refs[idx + 2]
    idx += 3
    if use_residual:
        res_ref = refs[idx]
        idx += 1
    o_ref, acc_ref = refs[idx], refs[idx + 1]

    k = pl.program_id(2)

    x = x_ref[...].astype(jnp.float32)
    if use_ln:
        # Fused pre-norm (only used when the whole, unpadded feature dim is in
        # this single K block — guarded in the wrapper).
        mean = jnp.mean(x, axis=-1, keepdims=True)
        diff = x - mean
        var = jnp.sum(diff * diff, axis=-1, keepdims=True) / jnp.float32(max(d_feat - 1, 1))
        inv = pl.reciprocal(jnp.sqrt(var) + EPS, approx=False)
        x = alpha_ref[0] * diff * inv + bias_ref[0]

    @pl.when(k == 0)
    def _():
        acc_ref[...] = jnp.zeros_like(acc_ref)

    acc_ref[...] += jnp.dot(
        x, w_ref[...].astype(jnp.float32), preferred_element_type=jnp.float32
    )

    @pl.when(k == pl.num_programs(2) - 1)
    def _():
        y = acc_ref[...] + b_ref[...].astype(jnp.float32)
        if use_relu:
            y = jnp.maximum(y, 0.0)
        if use_residual:
            y = y + res_ref[...].astype(jnp.float32)
        o_ref[...] = y.astype(o_ref.dtype)


def linear(x, w, b, *, ln=None, residual=None, relu=False, tm=256, tn=256, tk=512):
    M, K = x.shape
    K2, N = w.shape
    assert K == K2
    bm, bn, bk = _choose_tile(M, tm), _choose_tile(N, tn), _choose_tile(K, tk)

    # LN can only be fused when the whole (unpadded) feature dim fits one K block.
    fuse_ln = ln is not None and bk == K
    if ln is not None and not fuse_ln:
        x = layer_norm(x, ln[0], ln[1])

    Mp, Np, Kp = _round_up(M, bm), _round_up(N, bn), _round_up(K, bk)
    xp = _pad2(x, Mp, Kp)
    wp = _pad2(w, Kp, Np)
    bp = _pad2(b.reshape(1, N), 1, Np)

    inputs, in_specs = [], []
    if fuse_ln:
        inputs += [ln[0], ln[1]]
        in_specs += [
            pl.BlockSpec(memory_space=pltpu.SMEM),   # alpha (1,)
            pl.BlockSpec(memory_space=pltpu.SMEM),   # bias  (1,)
        ]
    inputs += [xp, wp, bp]
    in_specs += [
        pl.BlockSpec((bm, bk), lambda i, j, k: (i, k)),
        pl.BlockSpec((bk, bn), lambda i, j, k: (k, j)),
        pl.BlockSpec((1, bn), lambda i, j, k: (0, j)),
    ]
    if residual is not None:
        inputs.append(_pad2(residual, Mp, Np))
        in_specs.append(pl.BlockSpec((bm, bn), lambda i, j, k: (i, j)))

    kernel = functools.partial(
        _linear_kernel,
        use_ln=fuse_ln,
        use_relu=relu,
        use_residual=residual is not None,
        d_feat=K,
    )
    out = pl.pallas_call(
        kernel,
        out_shape=jax.ShapeDtypeStruct((Mp, Np), x.dtype),
        grid_spec=pltpu.PrefetchScalarGridSpec(
            num_scalar_prefetch=0,
            grid=(Mp // bm, Np // bn, Kp // bk),
            in_specs=in_specs,
            out_specs=pl.BlockSpec((bm, bn), lambda i, j, k: (i, j)),
            scratch_shapes=[pltpu.VMEM((bm, bn), jnp.float32)],
        ),
        compiler_params=pltpu.CompilerParams(
            dimension_semantics=("parallel", "parallel", "arbitrary"),
            vmem_limit_bytes=VMEM_LIMIT,
        ),
    )(*inputs)
    if (Mp, Np) != (M, N):
        out = out[:M, :N]
    return out


# ----------------------------------------------------------------------------
# Scaled-dot-product attention: one batch per grid step, all heads in-kernel.
# Works directly on the fused (B, S, 3d) QKV layout — no HBM head transposes.
# ----------------------------------------------------------------------------
def _attention_kernel(qkv_ref, m_ref, o_ref, *, h, d_k, scale):
    qkv = qkv_ref[...].astype(jnp.float32)        # (S, 3*d)
    m = m_ref[...]                                # (S, S)
    d = h * d_k
    outs = []
    for hi in range(h):                           # static loop over heads
        q = qkv[:, hi * d_k:(hi + 1) * d_k]
        k = qkv[:, d + hi * d_k: d + (hi + 1) * d_k]
        v = qkv[:, 2 * d + hi * d_k: 2 * d + (hi + 1) * d_k]
        scores = jax.lax.dot_general(
            q, k, (((1,), (1,)), ((), ())), preferred_element_type=jnp.float32
        ) * scale
        scores = jnp.where(m == 0, jnp.float32(-1e9), scores)
        scores = scores - jnp.max(scores, axis=-1, keepdims=True)
        p = jnp.exp(scores)
        p = p * pl.reciprocal(jnp.sum(p, axis=-1, keepdims=True), approx=False)
        outs.append(jnp.dot(p, v, preferred_element_type=jnp.float32))
    o_ref[...] = jnp.concatenate(outs, axis=-1).astype(o_ref.dtype)


def multi_head_attention(qkv, mask, h):
    """qkv: (B, S, 3*d) = [Q | K | V]; mask: (B, 1, S, S) with 0 = masked out."""
    b, s, d3 = qkv.shape
    d = d3 // 3
    d_k = d // h
    kernel = functools.partial(_attention_kernel, h=h, d_k=d_k, scale=1.0 / math.sqrt(d_k))
    # TODO(synk): for long sequences switch to a flash-style online-softmax kernel
    # tiled over the KV axis instead of materializing the full S x S scores.
    return pl.pallas_call(
        kernel,
        out_shape=jax.ShapeDtypeStruct((b, s, d), qkv.dtype),
        grid_spec=pltpu.PrefetchScalarGridSpec(
            num_scalar_prefetch=0,
            grid=(b,),
            in_specs=[
                pl.BlockSpec((None, s, d3), lambda bi: (bi, 0, 0)),
                pl.BlockSpec((None, None, s, s), lambda bi: (bi, 0, 0, 0)),
            ],
            out_specs=pl.BlockSpec((None, s, d), lambda bi: (bi, 0, 0)),
        ),
        compiler_params=pltpu.CompilerParams(
            dimension_semantics=("parallel",),
            vmem_limit_bytes=VMEM_LIMIT,
        ),
    )(qkv, mask)


# ----------------------------------------------------------------------------
# EncoderBlock forward
# ----------------------------------------------------------------------------
def encoder_block_forward(x, params, src_mask):
    b, s, d = x.shape
    h = params["h"]
    rows = b * s
    x2 = x.reshape(rows, d)

    # One-off parameter prep: fold Q/K/V weights into a single (d, 3d) projection.
    w_qkv = jnp.concatenate([params["wq"], params["wk"], params["wv"]], axis=1)
    b_qkv = jnp.concatenate([params["bq"], params["bk"], params["bv"]])

    # --- ResidualConnection[0]: x + W_o( MHA(LN1(x)) ) ---
    qkv = linear(x2, w_qkv, b_qkv, ln=(params["alpha1"], params["bias1"]))  # fused LN1
    attn = multi_head_attention(qkv.reshape(b, s, 3 * d), src_mask, h)
    x2 = linear(attn.reshape(rows, d), params["wo"], params["bo"], residual=x2)  # fused +x

    # --- ResidualConnection[1]: x + W2( relu( W1(LN2(x)) ) ) ---
    hdn = linear(x2, params["w1"], params["b1"],
                 ln=(params["alpha2"], params["bias2"]), relu=True)          # fused LN2+ReLU
    x2 = linear(hdn, params["w2"], params["b2"], residual=x2)                # fused +x

    return x2.reshape(b, s, d)


# ----------------------------------------------------------------------------
# Pure-JAX reference (mirrors the PyTorch module in eval mode)
# ----------------------------------------------------------------------------
def _reference(x, p, mask):
    def ln(t, a, bb):
        mean = jnp.mean(t, axis=-1, keepdims=True)
        std = jnp.sqrt(
            jnp.sum((t - mean) ** 2, axis=-1, keepdims=True) / (t.shape[-1] - 1)
        )
        return a * (t - mean) / (std + EPS) + bb

    b, s, d = x.shape
    h = p["h"]
    dk = d // h
    n1 = ln(x, p["alpha1"][0], p["bias1"][0])
    q = n1 @ p["wq"] + p["bq"]
    k = n1 @ p["wk"] + p["bk"]
    v = n1 @ p["wv"] + p["bv"]
    qh = q.reshape(b, s, h, dk).transpose(0, 2, 1, 3)
    kh = k.reshape(b, s, h, dk).transpose(0, 2, 1, 3)
    vh = v.reshape(b, s, h, dk).transpose(0, 2, 1, 3)
    scores = (qh @ kh.transpose(0, 1, 3, 2)) / math.sqrt(dk)
    scores = jnp.where(mask == 0, -1e9, scores)
    w = jax.nn.softmax(scores, axis=-1)
    attn = (w @ vh).transpose(0, 2, 1, 3).reshape(b, s, d)
    x = x + attn @ p["wo"] + p["bo"]
    n2 = ln(x, p["alpha2"][0], p["bias2"][0])
    ff = jnp.maximum(n2 @ p["w1"] + p["b1"], 0.0) @ p["w2"] + p["b2"]
    return x + ff


if __name__ == "__main__":
    key = jax.random.PRNGKey(0)
    batch, seq, d_model, n_heads, d_ff = 2, 8, 32, 4, 64
    keys = jax.random.split(key, 16)

    def w(kk, shape, scale=0.1):
        return (scale * jax.random.normal(kk, shape)).astype(jnp.float32)

    x = jax.random.normal(keys[0], (batch, seq, d_model), dtype=jnp.float32)
    params = {
        "h": n_heads,
        "alpha1": jnp.ones((1,), jnp.float32), "bias1": jnp.zeros((1,), jnp.float32),
        "alpha2": jnp.ones((1,), jnp.float32), "bias2": jnp.zeros((1,), jnp.float32),
        "wq": w(keys[1], (d_model, d_model)), "bq": w(keys[2], (d_model,)),
        "wk": w(keys[3], (d_model, d_model)), "bk": w(keys[4], (d_model,)),
        "wv": w(keys[5], (d_model, d_model)), "bv": w(keys[6], (d_model,)),
        "wo": w(keys[7], (d_model, d_model)), "bo": w(keys[8], (d_model,)),
        "w1": w(keys[9], (d_model, d_ff)),    "b1": w(keys[10], (d_ff,)),
        "w2": w(keys[11], (d_ff, d_model)),   "b2": w(keys[12], (d_model,)),
    }
    # Causal mask exercising masked_fill(mask == 0, -1e9).
    src_mask = jnp.tril(jnp.ones((seq, seq), jnp.float32))[None, None]
    src_mask = jnp.broadcast_to(src_mask, (batch, 1, seq, seq))

    out = encoder_block_forward(x, params, src_mask)
    out = jax.block_until_ready(out)

    ref = _reference(x, params, src_mask)
    assert out.shape == (batch, seq, d_model)
    assert jnp.allclose(out, ref, atol=1e-4, rtol=1e-4), float(jnp.max(jnp.abs(out - ref)))
    print("KERNEL_OK")
</pallas_src>

<mosaic_0001>
module attributes {stable_mosaic.version = 11 : i64} {
  func.func @_linear_kernel(%arg0: i32, %arg1: i32, %arg2: i32, %arg3: memref<1xf32, #tpu.memory_space<smem>>, %arg4: memref<1xf32, #tpu.memory_space<smem>>, %arg5: memref<16x32xf32, #tpu.memory_space<vmem>>, %arg6: memref<32x96xf32, #tpu.memory_space<vmem>>, %arg7: memref<1x96xf32, #tpu.memory_space<vmem>>, %arg8: memref<16x96xf32, #tpu.memory_space<vmem>>, %arg9: memref<16x96xf32, #tpu.memory_space<vmem>>) attributes {dimension_semantics = [#tpu.dimension_semantics<parallel>, #tpu.dimension_semantics<parallel>, #tpu.dimension_semantics<arbitrary>], iteration_bounds = array<i64: 1, 1, 1>, scalar_prefetch = 0 : i64, scratch_operands = 1 : i64, tpu.core_type = #tpu.core_type<tc>, window_params = [{transform_indices = @transform_0, window_bounds = array<i64: 1>}, {transform_indices = @transform_1, window_bounds = array<i64: 1>}, {transform_indices = @transform_2, window_bounds = array<i64: 16, 32>}, {transform_indices = @transform_3, window_bounds = array<i64: 32, 96>}, {transform_indices = @transform_4, window_bounds = array<i64: 1, 96>}, {transform_indices = @transform_5, window_bounds = array<i64: 16, 96>}]} {
    %c0 = arith.constant 0 : index
    %c0_0 = arith.constant 0 : index
    %0 = vector.load %arg5[%c0, %c0_0] : memref<16x32xf32, #tpu.memory_space<vmem>>, vector<16x32xf32>
    %cst = arith.constant dense<0.000000e+00> : vector<16xf32>
    %1 = vector.multi_reduction <add>, %0, %cst [1] : vector<16x32xf32> to vector<16xf32>
    %2 = vector.shape_cast %1 : vector<16xf32> to vector<16x1xf32>
    %cst_1 = arith.constant 3.200000e+01 : f32
    %3 = vector.broadcast %cst_1 : f32 to vector<16x1xf32>
    %4 = arith.divf %2, %3 : vector<16x1xf32>
    %5 = vector.broadcast %4 : vector<16x1xf32> to vector<16x32xf32>
    %6 = arith.subf %0, %5 : vector<16x32xf32>
    %7 = arith.mulf %6, %6 : vector<16x32xf32>
    %cst_2 = arith.constant dense<0.000000e+00> : vector<16xf32>
    %8 = vector.multi_reduction <add>, %7, %cst_2 [1] : vector<16x32xf32> to vector<16xf32>
    %9 = vector.shape_cast %8 : vector<16xf32> to vector<16x1xf32>
    %cst_3 = arith.constant 3.100000e+01 : f32
    %10 = vector.broadcast %cst_3 : f32 to vector<16x1xf32>
    %11 = arith.divf %9, %10 : vector<16x1xf32>
    %12 = math.sqrt %11 : vector<16x1xf32>
    %cst_4 = arith.constant 9.99999997E-7 : f32
    %13 = vector.broadcast %cst_4 : f32 to vector<16x1xf32>
    %14 = arith.addf %12, %13 : vector<16x1xf32>
    %15 = tpu.reciprocal %14 : vector<16x1xf32> -> vector<16x1xf32>
    %c0_5 = arith.constant 0 : index
    %16 = memref.load %arg3[%c0_5] : memref<1xf32, #tpu.memory_space<smem>>
    %17 = vector.broadcast %16 : f32 to vector<16x32xf32>
    %18 = arith.mulf %17, %6 : vector<16x32xf32>
    %19 = vector.broadcast %15 : vector<16x1xf32> to vector<16x32xf32>
    %20 = arith.mulf %18, %19 : vector<16x32xf32>
    %c0_6 = arith.constant 0 : index
    %21 = memref.load %arg4[%c0_6] : memref<1xf32, #tpu.memory_space<smem>>
    %22 = vector.broadcast %21 : f32 to vector<16x32xf32>
    %23 = arith.addf %20, %22 : vector<16x32xf32>
    %c0_i32 = arith.constant 0 : i32
    %24 = arith.cmpi eq, %arg2, %c0_i32 : i32
    %25 = arith.extui %24 : i1 to i32
    %c0_i32_7 = arith.constant 0 : i32
    %26 = arith.cmpi ne, %25, %c0_i32_7 : i32
    scf.if %26 {
      %cst_17 = arith.constant 0.000000e+00 : f32
      %35 = vector.broadcast %cst_17 : f32 to vector<16x96xf32>
      %c0_18 = arith.constant 0 : index
      %c0_19 = arith.constant 0 : index
      %36 = vector.load %arg9[%c0_18, %c0_19] : memref<16x96xf32, #tpu.memory_space<vmem>>, vector<16x96xf32>
      tpu.vector_store %arg9[%c0_18, %c0_19], %35 {strides = array<i32>} : memref<16x96xf32, #tpu.memory_space<vmem>>, vector<16x96xf32>,
    } else {
    }
    %c0_8 = arith.constant 0 : index
    %c0_9 = arith.constant 0 : index
    %27 = vector.load %arg9[%c0_8, %c0_9] : memref<16x96xf32, #tpu.memory_space<vmem>>, vector<16x96xf32>
    %c0_10 = arith.constant 0 : index
    %c0_11 = arith.constant 0 : index
    %28 = vector.load %arg6[%c0_10, %c0_11] : memref<32x96xf32, #tpu.memory_space<vmem>>, vector<32x96xf32>
    %cst_12 = arith.constant dense<0.000000e+00> : vector<16x96xf32>
    %29 = tpu.matmul %23, %28, %cst_12 {dimension_numbers = #tpu.dot_dimension_numbers<[1], [0], [0], [1], [0, 0, 1, 1], [], []>} : vector<16x32xf32>, vector<32x96xf32>, vector<16x96xf32> -> vector<16x96xf32>
    %30 = arith.addf %27, %29 : vector<16x96xf32>
    %c0_13 = arith.constant 0 : index
    %c0_14 = arith.constant 0 : index
    %31 = vector.load %arg9[%c0_13, %c0_14] : memref<16x96xf32, #tpu.memory_space<vmem>>, vector<16x96xf32>
    tpu.vector_store %arg9[%c0_13, %c0_14], %30 {strides = array<i32>} : memref<16x96xf32, #tpu.memory_space<vmem>>, vector<16x96xf32>,
    %c0_i32_15 = arith.constant 0 : i32
    %32 = arith.cmpi eq, %arg2, %c0_i32_15 : i32
    %33 = arith.extui %32 : i1 to i32
    %c0_i32_16 = arith.constant 0 : i32
    %34 = arith.cmpi ne, %33, %c0_i32_16 : i32
    scf.if %34 {
      %c0_17 = arith.constant 0 : index
      %c0_18 = arith.constant 0 : index
      %35 = vector.load %arg9[%c0_17, %c0_18] : memref<16x96xf32, #tpu.memory_space<vmem>>, vector<16x96xf32>
      %c0_19 = arith.constant 0 : index
      %c0_20 = arith.constant 0 : index
      %36 = vector.load %arg7[%c0_19, %c0_20] : memref<1x96xf32, #tpu.memory_space<vmem>>, vector<1x96xf32>
      %37 = vector.broadcast %36 : vector<1x96xf32> to vector<16x96xf32>
      %38 = arith.addf %35, %37 : vector<16x96xf32>
      %c0_21 = arith.constant 0 : index
      %c0_22 = arith.constant 0 : index
      %39 = vector.load %arg8[%c0_21, %c0_22] : memref<16x96xf32, #tpu.memory_space<vmem>>, vector<16x96xf32>
      tpu.vector_store %arg8[%c0_21, %c0_22], %38 {strides = array<i32>} : memref<16x96xf32, #tpu.memory_space<vmem>>, vector<16x96xf32>,
    } else {
    }
    return
  }
  func.func @transform_0(%arg0: i32, %arg1: i32, %arg2: i32) -> i32 {
    %c0_i32 = arith.constant 0 : i32
    %c0_i32_0 = arith.constant 0 : i32
    return %c0_i32 : i32
  }
  func.func @transform_1(%arg0: i32, %arg1: i32, %arg2: i32) -> i32 {
    %c0_i32 = arith.constant 0 : i32
    %c0_i32_0 = arith.constant 0 : i32
    return %c0_i32 : i32
  }
  func.func @transform_2(%arg0: i32, %arg1: i32, %arg2: i32) -> (i32, i32) {
    %c0_i32 = arith.constant 0 : i32
    return %arg0, %arg2 : i32, i32
  }
  func.func @transform_3(%arg0: i32, %arg1: i32, %arg2: i32) -> (i32, i32) {
    %c0_i32 = arith.constant 0 : i32
    return %arg2, %arg1 : i32, i32
  }
  func.func @transform_4(%arg0: i32, %arg1: i32, %arg2: i32) -> (i32, i32) {
    %c0_i32 = arith.constant 0 : i32
    %c0_i32_0 = arith.constant 0 : i32
    return %c0_i32, %arg1 : i32, i32
  }
  func.func @transform_5(%arg0: i32, %arg1: i32, %arg2: i32) -> (i32, i32) {
    %c0_i32 = arith.constant 0 : i32
    return %arg0, %arg1 : i32, i32
  }
}

</mosaic_0001>

<llo_original>
// kernel: tpu_custom_call.1
$region0: #{tpu_custom_call.1}
  #allocation0 [shape = 'u32[]', space=smem, size = 0x4, offset = 0x4, fixed_abs, tag = 'smem constant byte address 0x4 - core index']
  #allocation1 [shape = 'u32[72,128]{1,0:T(1,128)}', space=vmem, size = 0x9000, scoped, tag = 'internal scratch']
  #allocation2 [shape = 'f32[16,96]{1,0:T(8,128)}', space=vmem, size = 0x2000, scoped, tag = 'scratch operand']
  #allocation3 [shape = 'f32[1]{0:T(128)S(6)}', space=smem, size = 0x200, scoped, tag = 'scoped memory for tpu_custom_call.1']
  #allocation4 [shape = 'f32[1]{0:T(128)S(6)}', space=smem, size = 0x200, scoped, tag = 'scoped memory for tpu_custom_call.1']
  %s0 = inlined_call_operand.<no memory space> [shape: f32[1], index: 0, kind: input, shape index: {}]
  %s1 = inlined_call_operand.<no memory space> [shape: f32[1], index: 1, kind: input, shape index: {}]
  %s2 = inlined_call_operand.hbm [shape: f32[16,32], index: 2, kind: input, shape index: {}]
  %s3 = inlined_call_operand.hbm [shape: f32[32,96], index: 3, kind: input, shape index: {}]
  %s4 = inlined_call_operand.vmem [shape: f32[1,96], index: 4, kind: input, shape index: {}]
  %s5 = inlined_call_operand.hbm [shape: f32[16,96], index: 5, kind: output, shape index: {}]
  %s6 = sld [smem:[#allocation0]]
  $region46: #{tpu_custom_call.1} parent=0
    _
  %s8 = ssub.s32 1, %s6
  %s9 = scalar_select 0, %s8, %s6
  %10 = sst [smem:[#allocation3]] %s0
  %11 = sst [smem:[#allocation4]] %s1
  $region1: #{tpu_custom_call.1} parent=0
    #allocation5 [shape = 'u8[8192]{0}', space=vmem, size = 0x2000, scoped, tag = 'input window, operand 2, single buffered']
    #allocation6 [shape = 's32[1]{0}', space=sflag, size = 0x4, scoped, tag = 'scoped memory for tpu_custom_call.1']
    #allocation7 [shape = 's32[1]{0}', space=sflag, size = 0x4, scoped, tag = 'scoped memory for tpu_custom_call.1']
    #allocation8 [shape = 'u8[16384]{0}', space=vmem, size = 0x4000, scoped, tag = 'input window, operand 3, single buffered']
    #allocation9 [shape = 's32[1]{0}', space=sflag, size = 0x4, scoped, tag = 'scoped memory for tpu_custom_call.1']
    #allocation10 [shape = 'u8[8192]{0}', space=vmem, size = 0x2000, scoped, tag = 'output window, operand 0, single buffered']
    %12 = vsyncpa [#allocation6], 0
    %13 = vsyncpa [#allocation9], 0
    %14 = vsyncpa [#allocation7], 0
    // Predicated region
    $region2: #{tpu_custom_call.1} parent=1 // pred_check
      _
    $region3: #{tpu_custom_call.1} parent=1 // pred_check_branch
      %16 = sbr.rel (0) target = $region5
    $region4: #{tpu_custom_call.1} parent=1 // pred_region
      _
    $region5: #{tpu_custom_call.1} parent=1 // pred_fallthru
      _
    // Predicated region
    $region6: #{tpu_custom_call.1} parent=1 // pred_check
      _
    $region7: #{tpu_custom_call.1} parent=1 // pred_check_branch
      %18 = sbr.rel (0) target = $region9
    $region8: #{tpu_custom_call.1} parent=1 // pred_region
      _
    $region9: #{tpu_custom_call.1} parent=1 // pred_fallthru
      _
    // Predicated region
    $region10: #{tpu_custom_call.1} parent=1 // pred_check
      _
    $region11: #{tpu_custom_call.1} parent=1 // pred_check_branch
      %20 = sbr.rel (0) target = $region13
    $region12: #{tpu_custom_call.1} parent=1 // pred_region
      %22 = vsyncadd [#allocation6], 0
      %s23 = sshll.u32 %s2, 4
      %s24 = int_to_ptr.hbm [resolvable:$true] %s23
      %s25 = sshll.u32 [#allocation5], 4
      %s26 = int_to_ptr.vmem [resolvable:$true] %s25
      %31 = dma.hbm_to_vmem [thread:$0]  %s24, 256, %s26, [#allocation6], 128, 128, 8
    $region13: #{tpu_custom_call.1} parent=1 // pred_fallthru
      _
    // Predicated region
    $region14: #{tpu_custom_call.1} parent=1 // pred_check
      _
    $region15: #{tpu_custom_call.1} parent=1 // pred_check_branch
      %33 = sbr.rel (0) target = $region17
    $region16: #{tpu_custom_call.1} parent=1 // pred_region
      %35 = vsyncadd [#allocation9], 0
      %s36 = sshll.u32 %s3, 4
      %s37 = int_to_ptr.hbm [resolvable:$true] %s36
      %s38 = sshll.u32 [#allocation8], 4
      %s39 = int_to_ptr.vmem [resolvable:$true] %s38
      %44 = dma.hbm_to_vmem [thread:$0]  %s37, 512, %s39, [#allocation9], 128, 128, 8
    $region17: #{tpu_custom_call.1} parent=1 // pred_fallthru
      _
    // Predicated region
    $region18: #{tpu_custom_call.1} parent=1 // pred_check
      _
    $region19: #{tpu_custom_call.1} parent=1 // pred_check_branch
      %46 = sbr.rel (0) target = $region21
    $region20: #{tpu_custom_call.1} parent=1 // pred_region
      _
    $region21: #{tpu_custom_call.1} parent=1 // pred_fallthru
      _
    // Predicated region
    $region22: #{tpu_custom_call.1} parent=1 // pred_check
      _
    $region23: #{tpu_custom_call.1} parent=1 // pred_check_branch
      %48 = sbr.rel (0) target = $region25
    $region24: #{tpu_custom_call.1} parent=1 // pred_region
      %50 = dma.done [#allocation6], 256
    $region25: #{tpu_custom_call.1} parent=1 // pred_fallthru
      _
    // Predicated region
    $region26: #{tpu_custom_call.1} parent=1 // pred_check
      _
    $region27: #{tpu_custom_call.1} parent=1 // pred_check_branch
      %52 = sbr.rel (0) target = $region29
    $region28: #{tpu_custom_call.1} parent=1 // pred_region
      %54 = dma.done [#allocation9], 512
    $region29: #{tpu_custom_call.1} parent=1 // pred_fallthru
      _
    %v55 = vld [vmem:[#allocation5] sm:$0xff]
    %v56 = vld [vmem:[#allocation5 + $0x8] sm:$0xff]
    %vm57 = vcmask 261120
    %v58 = vsel %vm57, %v55, 0.0
    %59 = vadd.xlane.f32.xlu0 %v58
    %v60 = vpop.xlane.xlu0 %59
    %v61 = vsel %vm57, %v56, 0.0
    %62 = vadd.xlane.f32.xlu0 %v61
    %v63 = vpop.xlane.xlu0 %62
    %v64 = vrcp.pop 32.0
    %v65 = vmul.f32 32.0, %v64
    %v66 = vsub.f32 1.0, %v65
    %v67 = vmul.f32 %v64, %v66
    %v68 = vadd.f32 %v64, %v67
    %vm69 = vweird.f32 %v64
    %v70 = vsel %vm69, %v64, %v68
    %v71 = vmul.f32 %v60, %v70
    %v72 = vmul.f32 %v63, %v70
    %v73 = vsub.f32 %v55, %v71
    %v74 = vsub.f32 %v56, %v72
    %v75 = vmul.f32 %v73, %v73
    %v76 = vmul.f32 %v74, %v74
    %v77 = vsel %vm57, %v75, 0.0
    %78 = vadd.xlane.f32.xlu0 %v77
    %v79 = vpop.xlane.xlu0 %78
    %v80 = vsel %vm57, %v76, 0.0
    %81 = vadd.xlane.f32.xlu0 %v80
    %v82 = vpop.xlane.xlu0 %81
    %v83 = vrcp.pop 31.0
    %v84 = vmul.f32 31.0, %v83
    %v85 = vsub.f32 1.0, %v84
    %v86 = vmul.f32 %v83, %v85
    %v87 = vadd.f32 %v83, %v86
    %vm88 = vweird.f32 %v83
    %v89 = vsel %vm88, %v83, %v87
    %v90 = vmul.f32 %v79, %v89
    %v91 = vmul.f32 %v82, %v89
    %v92 = vrsqrt.pop %v90
    %v93 = vmul.f32 %v92, %v90
    %v94 = vmul.f32 %v93, %v92
    %v95 = vmul.f32 0.5, %v94
    %v96 = vsub.f32 1.5, %v95
    %v97 = vmul.f32 %v92, %v96
    %v98 = vmul.f32 %v90, %v97
    %vm99 = vcmp.eq.f32.partialorder %v90, inf
    %v100 = vsel %vm99, %v90, %v98
    %vm101 = vcmp.eq.f32.partialorder %v90, 0.0
    %v102 = vand.u32 %v90, 2147483648
    %v103 = vsel %vm101, %v102, %v100
    %v104 = vrsqrt.pop %v91
    %v105 = vmul.f32 %v104, %v91
    %v106 = vmul.f32 %v105, %v104
    %v107 = vmul.f32 0.5, %v106
    %v108 = vsub.f32 1.5, %v107
    %v109 = vmul.f32 %v104, %v108
    %v110 = vmul.f32 %v91, %v109
    %vm111 = vcmp.eq.f32.partialorder %v91, inf
    %v112 = vsel %vm111, %v91, %v110
    %vm113 = vcmp.eq.f32.partialorder %v91, 0.0
    %v114 = vand.u32 %v91, 2147483648
    %v115 = vsel %vm113, %v114, %v112
    %v116 = vadd.f32 %v103, 1e-06
    %v117 = vadd.f32 %v115, 1e-06
    %v118 = vrcp.pop %v116
    %v119 = vmul.f32 %v116, %v118
    %v120 = vsub.f32 1.0, %v119
    %v121 = vmul.f32 %v118, %v120
    %v122 = vadd.f32 %v118, %v121
    %vm123 = vweird.f32 %v116
    %vm124 = vweird.f32 %v118
    %vm125 = vmor %vm123, %vm124
    %v126 = vsel %vm125, %v118, %v122
    %v127 = vand.u32 2147483647, %v116
    %vm128 = vcmp.eq.f32.partialorder %v127, 8.507059e+37
    %v129 = vand.u32 %v116, 2147483648
    %v130 = vor.u32 1.1754944e-38, %v129
    %v131 = vsel %vm128, %v130, %v126
    %v132 = vrcp.pop %v117
    %v133 = vmul.f32 %v117, %v132
    %v134 = vsub.f32 1.0, %v133
    %v135 = vmul.f32 %v132, %v134
    %v136 = vadd.f32 %v132, %v135
    %vm137 = vweird.f32 %v117
    %vm138 = vweird.f32 %v132
    %vm139 = vmor %vm137, %vm138
    %v140 = vsel %vm139, %v132, %v136
    %v141 = vand.u32 2147483647, %v117
    %vm142 = vcmp.eq.f32.partialorder %v141, 8.507059e+37
    %v143 = vand.u32 %v117, 2147483648
    %v144 = vor.u32 1.1754944e-38, %v143
    %v145 = vsel %vm142, %v144, %v140
    %s146 = sld [smem:[#allocation3]]
    %v147 = vstv %s146
    %v148 = vmul.f32 %v147, %v73
    %v149 = vmul.f32 %v147, %v74
    %v150 = vmul.f32 %v148, %v131
    %v151 = vmul.f32 %v149, %v145
    %s152 = sld [smem:[#allocation4]]
    %v153 = vstv %s152
    %v154 = vadd.f32 %v150, %v153
    %v155 = vadd.f32 %v151, %v153
    %p156 = scmp.eq.s32.totalorder 0, 0
    // Predicated region
    $region30: #{tpu_custom_call.1} parent=1 // pred_check
      %p157 = pneg %p156
    $region31: #{tpu_custom_call.1} parent=1 // pred_check_branch
      %159 = sbr.rel (%p157) target = $region33
    $region32: #{tpu_custom_call.1} parent=1 // pred_region
      %vm160 = vcmask 785408
      %161 = vst.msk [vmem:[#allocation2] sm:$0xff] %vm160, 0.0
      %162 = vst.msk [vmem:[#allocation2 + $0x8] sm:$0xff] %vm160, 0.0
    $region33: #{tpu_custom_call.1} parent=1 // pred_fallthru
      _
    %v163 = vld [vmem:[#allocation2] sm:$0xff]
    %v164 = vld [vmem:[#allocation2 + $0x8] sm:$0xff]
    %v165 = vld [vmem:[#allocation8] sm:$0xff]
    %v166 = vld [vmem:[#allocation8 + $0x8] sm:$0xff]
    %v167 = vld [vmem:[#allocation8 + $0x10] sm:$0xff]
    %v168 = vld [vmem:[#allocation8 + $0x18] sm:$0xff]
    %v170 = vsel %vm57, %v154, 0
    %v173 = vsel %vm57, %v155, 0
    %175 = vmatpush.msra.mxu0 0.0
    %176 = vmatpush.msra.mxu0 0.0
    %177 = vmatpush.msra.mxu0 0.0
    %178 = vmatpush.msra.mxu0 0.0
    %179 = vmatpush.msra.mxu0 0.0
    %180 = vmatpush.msra.mxu0 0.0
    %181 = vmatpush.msra.mxu0 0.0
    %182 = vmatpush.msra.mxu0 0.0
    %183 = vmatpush.msra.mxu0 0.0
    %184 = vmatpush.msra.mxu0 0.0
    %185 = vmatpush.msra.mxu0 0.0
    %186 = vmatpush.msra.mxu0 0.0
    %187 = vmatpush.msra.mxu0 %v168
    %188 = vmatpush.msra.mxu0 %v167
    %189 = vmatpush.msra.mxu0 %v166
    %190 = vmatpush.msra.mxu0 %v165
    %191 = vmatmul.f32.gmra.mxu0 %v170
    %v192 = vpop.f32.mrf.mxu0
    %v193 = vadd.f32 0.0, %v192
    %194 = vmatmul.f32.gmra.mxu0 %v173
    %v195 = vpop.f32.mrf.mxu0
    %v196 = vadd.f32 0.0, %v195
    %197 = vdwg.mxu0
    %v198 = vadd.f32 %v163, %v193
    %v199 = vadd.f32 %v164, %v196
    %vm200 = vcmask 785408
    %201 = vst.msk [vmem:[#allocation2] sm:$0xff] %vm200, %v198
    %202 = vst.msk [vmem:[#allocation2 + $0x8] sm:$0xff] %vm200, %v199
    // Predicated region
    $region34: #{tpu_custom_call.1} parent=1 // pred_check
      %p203 = pneg %p156
    $region35: #{tpu_custom_call.1} parent=1 // pred_check_branch
      %205 = sbr.rel (%p203) target = $region37
    $region36: #{tpu_custom_call.1} parent=1 // pred_region
      %v206 = vld [vmem:[#allocation2] sm:$0xff]
      %v207 = vld [vmem:[#allocation2 + $0x8] sm:$0xff]
      %v208 = vld [vmem:[%s4] sm:$0x1]
      %v210 = vperm.slane %v208, 0
      %v212 = vadd.f32 %v206, %v210
      %v213 = vadd.f32 %v207, %v210
      %214 = vst.msk [vmem:[#allocation10] sm:$0xff] %vm200, %v212
      %215 = vst.msk [vmem:[#allocation10 + $0x8] sm:$0xff] %vm200, %v213
    $region37: #{tpu_custom_call.1} parent=1 // pred_fallthru
      _
    // Predicated region
    $region38: #{tpu_custom_call.1} parent=1 // pred_check
      _
    $region39: #{tpu_custom_call.1} parent=1 // pred_check_branch
      %217 = sbr.rel (0) target = $region41
    $region40: #{tpu_custom_call.1} parent=1 // pred_region
      %219 = vsyncadd [#allocation7], 0
      %s220 = sshll.u32 [#allocation10], 4
      %s221 = int_to_ptr.vmem [resolvable:$true] %s220
      %s222 = sshll.u32 %s5, 4
      %s223 = int_to_ptr.hbm [resolvable:$true] %s222
      %228 = dma.vmem_to_hbm [thread:$0]  %s221, 256, %s223, [#allocation7], 128, 128, 8
    $region41: #{tpu_custom_call.1} parent=1 // pred_fallthru
      _
    // Predicated region
    $region42: #{tpu_custom_call.1} parent=1 // pred_check
      _
    $region43: #{tpu_custom_call.1} parent=1 // pred_check_branch
      %230 = sbr.rel (0) target = $region45
    $region44: #{tpu_custom_call.1} parent=1 // pred_region
      %232 = dma.done [#allocation7], 256
    $region45: #{tpu_custom_call.1} parent=1 // pred_fallthru
      _
    %233 = vsyncpa [#allocation6], 1
    %234 = vsyncpa [#allocation9], 1
    %235 = vsyncpa [#allocation7], 1

</llo_original>
